<compile_context>
chip_gen: v5e
topology: v5e:2x2
jax: 0.10.0
libtpu: 0.0.40
codegen_flags: <defaults>
</compile_context>

<pallas_src>
import jax
import jax.numpy as jnp
from jax.experimental import pallas as pl
from jax.experimental.pallas import tpu as pltpu


_SUBLANE = 16   # row-tile grain, safe for both f32 (8) and bf16 (16) sublanes


def _round_up(x, m):
    return ((x + m - 1) // m) * m


def _vmem_capacity_bytes():
    try:
        return int(pltpu.get_tpu_info().vmem_capacity_bytes)
    except Exception:
        return 64 * 1024 * 1024   # conservative fallback (v7x per-TC VMEM)


def _node_mlp_kernel(x_ref, w1_ref, b1_ref, w2_ref, b2_ref, o_ref):
    # Hidden layer: Linear + bias + ReLU.  x arrives in its storage dtype (f32)
    # and is cast to the weight dtype (bf16 by default) in-register, so the MXU
    # runs its bf16 path with f32 accumulation and HBM only ever sees the
    # original unpadded x.
    x = x_ref[...].astype(w1_ref.dtype)
    h = jnp.dot(x, w1_ref[...], preferred_element_type=jnp.float32)
    h = jnp.maximum(h + b1_ref[...], 0.0)
    # Final layer: Linear + bias, no activation (has_act=False).
    out = jnp.dot(h.astype(w2_ref.dtype), w2_ref[...],
                  preferred_element_type=jnp.float32)
    o_ref[...] = (out + b2_ref[...]).astype(o_ref.dtype)


def node_head_mlp(x, w1, b1, w2, b2, *, tile_n=1024,
                  compute_dtype=jnp.bfloat16):
    """Fused 2-layer MLP over node features via a single pallas_call.

    Reads x directly (no padded/cast HBM copy), keeps the weights resident in
    VMEM across row tiles, and writes an unpadded (n, dim_out) f32 output.
    """
    n, dim_in = x.shape
    dim_hidden = w1.shape[1]
    dim_out = w2.shape[1]

    if n == 0:
        return jnp.zeros((0, dim_out), jnp.float32)

    # Row tile: as big as tile_n allows (amortizes ~0.35 us/step grid overhead).
    # If the whole graph fits in one tile, use the exact row count (a block dim
    # equal to the full array dim is always legal).  Otherwise use a multiple of
    # the sublane grain and let Pallas mask the ragged last block.
    tile_cap = max(_SUBLANE, _round_up(tile_n, _SUBLANE))
    tile = n if n <= tile_cap else tile_cap
    grid_n = pl.cdiv(n, tile)

    cdt = jnp.dtype(compute_dtype)
    x_itemsize = jnp.dtype(x.dtype).itemsize

    # Weights cast once in the wrapper (tiny, resident); biases stay f32.
    w1c = w1.astype(compute_dtype)
    w2c = w2.astype(compute_dtype)
    b1r = b1.astype(jnp.float32).reshape(1, dim_hidden)
    b2r = b2.astype(jnp.float32).reshape(1, dim_out)

    # VMEM working set: double-buffered x / out tiles, (default double-buffered)
    # resident weights + biases, plus the f32 hidden intermediate + bf16 copy.
    # TODO(synk): if dim_hidden/dim_out grow beyond 128, single-buffer the
    # constant-index weight blocks via pipeline_mode=pl.Buffered(1).
    work_set = (2 * tile * dim_in * x_itemsize
                + 2 * tile * dim_out * 4
                + 2 * (dim_in * dim_hidden + dim_hidden * dim_out) * cdt.itemsize
                + 2 * (dim_hidden + dim_out) * 4
                + 2 * tile * dim_hidden * 4)
    cap = _vmem_capacity_bytes()
    vmem_limit = int(min(max(4 * work_set, 32 * 1024 * 1024), (cap * 3) // 4))
    vmem_limit = int(min(max(vmem_limit, 2 * work_set), cap))

    # Cost hint reflecting the real (unpadded) traffic of this memory-bound op.
    cost = pl.CostEstimate(
        flops=2 * n * (dim_in * dim_hidden + dim_hidden * dim_out),
        transcendentals=0,
        bytes_accessed=(n * dim_in * x_itemsize
                        + (dim_in * dim_hidden + dim_hidden * dim_out) * cdt.itemsize
                        + (dim_hidden + dim_out) * 4
                        + n * dim_out * 4),
    )

    return pl.pallas_call(
        _node_mlp_kernel,
        out_shape=jax.ShapeDtypeStruct((n, dim_out), jnp.float32),
        grid=(grid_n,),
        in_specs=[
            pl.BlockSpec((tile, dim_in), lambda i: (i, 0)),         # x row tile
            pl.BlockSpec((dim_in, dim_hidden), lambda i: (0, 0)),   # W1 (resident)
            pl.BlockSpec((1, dim_hidden), lambda i: (0, 0)),        # b1
            pl.BlockSpec((dim_hidden, dim_out), lambda i: (0, 0)),  # W2 (resident)
            pl.BlockSpec((1, dim_out), lambda i: (0, 0)),           # b2
        ],
        out_specs=pl.BlockSpec((tile, dim_out), lambda i: (i, 0)),
        compiler_params=pltpu.CompilerParams(
            dimension_semantics=("parallel",),
            vmem_limit_bytes=vmem_limit,
        ),
        cost_estimate=cost,
    )(x, w1c, b1r, w2c, b2r)


def diy_node_head_forward(x, binary_label, mask, params):
    """Full DIY_NodeHead.forward.

    The post-MP MLP is row-wise, so MLP(x)[mask] == MLP(x[mask]); gathering the
    masked rows first means the kernel only computes and writes the rows the
    head returns (no full-graph output + post-hoc boolean gather).
    NOTE: boolean-mask selection has a data-dependent output shape, so this
    wrapper is eager-only glue around the jit-able kernel.
    """
    w1, b1, w2, b2 = params
    idx = jnp.flatnonzero(mask).astype(jnp.int32)      # eager: dynamic shape OK
    label = jnp.take(binary_label, idx, axis=0)
    if int(idx.shape[0]) == 0:
        return jnp.zeros((0, w2.shape[1]), jnp.float32), label
    x_sel = jnp.take(x, idx, axis=0)                   # gather selected rows once
    pred = node_head_mlp(x_sel, w1, b1, w2, b2)
    # TODO(synk): for a fully jit-able path, pass a padded index list via
    # PrefetchScalarGridSpec and gather rows inside the kernel instead.
    return pred, label


if __name__ == "__main__":
    # Small shapes consistent with the module's forward:
    #   N nodes, dim_in node features, hidden width, dim_out prediction classes.
    N, DIM_IN, DIM_HIDDEN, DIM_OUT = 16, 32, 32, 8

    key = jax.random.PRNGKey(0)
    kx, kw1, kb1, kw2, kb2, km, kl = jax.random.split(key, 7)

    x = jax.random.normal(kx, (N, DIM_IN), dtype=jnp.float32)

    # Deterministic synthetic parameters for layer_post_mp (2-layer MLP, bias=True).
    w1 = jax.random.normal(kw1, (DIM_IN, DIM_HIDDEN), dtype=jnp.float32) * 0.1
    b1 = jax.random.normal(kb1, (DIM_HIDDEN,), dtype=jnp.float32) * 0.1
    w2 = jax.random.normal(kw2, (DIM_HIDDEN, DIM_OUT), dtype=jnp.float32) * 0.1
    b2 = jax.random.normal(kb2, (DIM_OUT,), dtype=jnp.float32) * 0.1

    # batch.train_mask / batch.binary_label analogues.
    mask = jax.random.bernoulli(km, p=0.5, shape=(N,))
    binary_label = jax.random.randint(kl, (N,), 0, 2, dtype=jnp.int32)

    pred, label = diy_node_head_forward(x, binary_label, mask, (w1, b1, w2, b2))
    jax.block_until_ready((pred, label))

    # Reference 1: same bf16-input / f32-accumulation recipe as the kernel (tight).
    cd = jnp.bfloat16
    h_bf = jnp.dot(x.astype(cd), w1.astype(cd),
                   preferred_element_type=jnp.float32) + b1
    h_bf = jnp.maximum(h_bf, 0.0)
    ref_bf = jnp.dot(h_bf.astype(cd), w2.astype(cd),
                     preferred_element_type=jnp.float32) + b2
    ref_pred_bf = ref_bf[mask]

    # Reference 2: true fp32 Linear -> ReLU -> Linear (loose; documents bf16 drift).
    h_f32 = jnp.maximum(jnp.dot(x, w1) + b1, 0.0)
    ref_f32 = jnp.dot(h_f32, w2) + b2
    ref_pred_f32 = ref_f32[mask]

    assert pred.shape == ref_pred_bf.shape
    assert jnp.allclose(pred, ref_pred_bf, atol=1e-4, rtol=1e-4), (
        float(jnp.max(jnp.abs(pred - ref_pred_bf))) if pred.size else 0.0)
    assert jnp.allclose(pred, ref_pred_f32, atol=5e-2, rtol=5e-2), (
        float(jnp.max(jnp.abs(pred - ref_pred_f32))) if pred.size else 0.0)
    assert jnp.array_equal(label, binary_label[mask])

    print("KERNEL_OK")
</pallas_src>

<mosaic_0001>
module attributes {stable_mosaic.version = 11 : i64} {
  func.func @_node_mlp_kernel(%arg0: i32, %arg1: memref<3x32xf32, #tpu.memory_space<vmem>>, %arg2: memref<32x32xbf16, #tpu.memory_space<vmem>>, %arg3: memref<1x32xf32, #tpu.memory_space<vmem>>, %arg4: memref<32x8xbf16, #tpu.memory_space<vmem>>, %arg5: memref<1x8xf32, #tpu.memory_space<vmem>>, %arg6: memref<3x8xf32, #tpu.memory_space<vmem>>) attributes {dimension_semantics = [#tpu.dimension_semantics<parallel>], iteration_bounds = array<i64: 1>, scalar_prefetch = 0 : i64, scratch_operands = 0 : i64, tpu.core_type = #tpu.core_type<tc>, window_params = [{transform_indices = @transform_0, window_bounds = array<i64: 3, 32>}, {pipeline_mode = #tpu.pipeline_mode<synchronous>, transform_indices = @transform_1, window_bounds = array<i64: 32, 32>}, {pipeline_mode = #tpu.pipeline_mode<synchronous>, transform_indices = @transform_2, window_bounds = array<i64: 1, 32>}, {pipeline_mode = #tpu.pipeline_mode<synchronous>, transform_indices = @transform_3, window_bounds = array<i64: 32, 8>}, {pipeline_mode = #tpu.pipeline_mode<synchronous>, transform_indices = @transform_4, window_bounds = array<i64: 1, 8>}, {transform_indices = @transform_5, window_bounds = array<i64: 3, 8>}]} {
    %c0 = arith.constant 0 : index
    %c0_0 = arith.constant 0 : index
    %0 = vector.load %arg1[%c0, %c0_0] : memref<3x32xf32, #tpu.memory_space<vmem>>, vector<3x32xf32>
    %1 = arith.truncf %0 : vector<3x32xf32> to vector<3x32xbf16>
    %c0_1 = arith.constant 0 : index
    %c0_2 = arith.constant 0 : index
    %2 = vector.load %arg2[%c0_1, %c0_2] : memref<32x32xbf16, #tpu.memory_space<vmem>>, vector<32x32xbf16>
    %cst = arith.constant dense<0.000000e+00> : vector<3x32xf32>
    %3 = tpu.matmul %1, %2, %cst {dimension_numbers = #tpu.dot_dimension_numbers<[1], [0], [0], [1], [0, 0, 1, 1], [], []>} : vector<3x32xbf16>, vector<32x32xbf16>, vector<3x32xf32> -> vector<3x32xf32>
    %c0_3 = arith.constant 0 : index
    %c0_4 = arith.constant 0 : index
    %4 = vector.load %arg3[%c0_3, %c0_4] : memref<1x32xf32, #tpu.memory_space<vmem>>, vector<1x32xf32>
    %5 = vector.broadcast %4 : vector<1x32xf32> to vector<3x32xf32>
    %6 = arith.addf %3, %5 : vector<3x32xf32>
    %cst_5 = arith.constant 0.000000e+00 : f32
    %7 = vector.broadcast %cst_5 : f32 to vector<3x32xf32>
    %8 = arith.maximumf %6, %7 : vector<3x32xf32>
    %9 = arith.truncf %8 : vector<3x32xf32> to vector<3x32xbf16>
    %c0_6 = arith.constant 0 : index
    %c0_7 = arith.constant 0 : index
    %10 = vector.load %arg4[%c0_6, %c0_7] : memref<32x8xbf16, #tpu.memory_space<vmem>>, vector<32x8xbf16>
    %cst_8 = arith.constant dense<0.000000e+00> : vector<3x8xf32>
    %11 = tpu.matmul %9, %10, %cst_8 {dimension_numbers = #tpu.dot_dimension_numbers<[1], [0], [0], [1], [0, 0, 1, 1], [], []>} : vector<3x32xbf16>, vector<32x8xbf16>, vector<3x8xf32> -> vector<3x8xf32>
    %c0_9 = arith.constant 0 : index
    %c0_10 = arith.constant 0 : index
    %12 = vector.load %arg5[%c0_9, %c0_10] : memref<1x8xf32, #tpu.memory_space<vmem>>, vector<1x8xf32>
    %13 = vector.broadcast %12 : vector<1x8xf32> to vector<3x8xf32>
    %14 = arith.addf %11, %13 : vector<3x8xf32>
    %c0_11 = arith.constant 0 : index
    %c0_12 = arith.constant 0 : index
    %15 = vector.load %arg6[%c0_11, %c0_12] : memref<3x8xf32, #tpu.memory_space<vmem>>, vector<3x8xf32>
    tpu.vector_store %arg6[%c0_11, %c0_12], %14 {strides = array<i32>} : memref<3x8xf32, #tpu.memory_space<vmem>>, vector<3x8xf32>,
    return
  }
  func.func @transform_0(%arg0: i32) -> (i32, i32) {
    %c0_i32 = arith.constant 0 : i32
    %c0_i32_0 = arith.constant 0 : i32
    return %arg0, %c0_i32 : i32, i32
  }
  func.func @transform_1(%arg0: i32) -> (i32, i32) {
    %c0_i32 = arith.constant 0 : i32
    %c0_i32_0 = arith.constant 0 : i32
    %c0_i32_1 = arith.constant 0 : i32
    return %c0_i32, %c0_i32_0 : i32, i32
  }
  func.func @transform_2(%arg0: i32) -> (i32, i32) {
    %c0_i32 = arith.constant 0 : i32
    %c0_i32_0 = arith.constant 0 : i32
    %c0_i32_1 = arith.constant 0 : i32
    return %c0_i32, %c0_i32_0 : i32, i32
  }
  func.func @transform_3(%arg0: i32) -> (i32, i32) {
    %c0_i32 = arith.constant 0 : i32
    %c0_i32_0 = arith.constant 0 : i32
    %c0_i32_1 = arith.constant 0 : i32
    return %c0_i32, %c0_i32_0 : i32, i32
  }
  func.func @transform_4(%arg0: i32) -> (i32, i32) {
    %c0_i32 = arith.constant 0 : i32
    %c0_i32_0 = arith.constant 0 : i32
    %c0_i32_1 = arith.constant 0 : i32
    return %c0_i32, %c0_i32_0 : i32, i32
  }
  func.func @transform_5(%arg0: i32) -> (i32, i32) {
    %c0_i32 = arith.constant 0 : i32
    %c0_i32_0 = arith.constant 0 : i32
    return %arg0, %c0_i32 : i32, i32
  }
}

</mosaic_0001>

<llo_original>
// kernel: tpu_custom_call.1
$region0: #{tpu_custom_call.1}
  #allocation0 [shape = 'u32[]', space=smem, size = 0x4, offset = 0x4, fixed_abs, tag = 'smem constant byte address 0x4 - core index']
  #allocation1 [shape = 'u32[72,128]{1,0:T(1,128)}', space=vmem, size = 0x9000, scoped, tag = 'internal scratch']
  %s0 = inlined_call_operand.vmem [shape: f32[3,32], index: 0, kind: input, shape index: {}]
  %s1 = inlined_call_operand.vmem [shape: bf16[32,32], index: 1, kind: input, shape index: {}]
  %s2 = inlined_call_operand.vmem [shape: f32[1,32], index: 2, kind: input, shape index: {}]
  %s3 = inlined_call_operand.vmem [shape: bf16[32,8], index: 3, kind: input, shape index: {}]
  %s4 = inlined_call_operand.vmem [shape: f32[1,8], index: 4, kind: input, shape index: {}]
  %s5 = inlined_call_operand.hbm [shape: f32[3,8], index: 5, kind: output, shape index: {}]
  %s6 = sld [smem:[#allocation0]]
  $region30: #{tpu_custom_call.1} parent=0
    _
  %s8 = ssub.s32 1, %s6
  %s9 = scalar_select 0, %s8, %s6
  $region1: #{tpu_custom_call.1} parent=0
    #allocation2 [shape = 'u8[2048]{0}', space=vmem, size = 0x800, scoped, tag = 'output window, operand 0, single buffered']
    #allocation3 [shape = 's32[1]{0}', space=sflag, size = 0x4, scoped, tag = 'scoped memory for tpu_custom_call.1']
    %10 = vsyncpa [#allocation3], 0
    // Predicated region
    $region2: #{tpu_custom_call.1} parent=1 // pred_check
      _
    $region3: #{tpu_custom_call.1} parent=1 // pred_check_branch
      %12 = sbr.rel (0) target = $region5
    $region4: #{tpu_custom_call.1} parent=1 // pred_region
      _
    $region5: #{tpu_custom_call.1} parent=1 // pred_fallthru
      _
    // Predicated region
    $region6: #{tpu_custom_call.1} parent=1 // pred_check
      _
    $region7: #{tpu_custom_call.1} parent=1 // pred_check_branch
      %14 = sbr.rel (0) target = $region9
    $region8: #{tpu_custom_call.1} parent=1 // pred_region
      _
    $region9: #{tpu_custom_call.1} parent=1 // pred_fallthru
      _
    // Predicated region
    $region10: #{tpu_custom_call.1} parent=1 // pred_check
      _
    $region11: #{tpu_custom_call.1} parent=1 // pred_check_branch
      %16 = sbr.rel (0) target = $region13
    $region12: #{tpu_custom_call.1} parent=1 // pred_region
      _
    $region13: #{tpu_custom_call.1} parent=1 // pred_fallthru
      _
    // Predicated region
    $region14: #{tpu_custom_call.1} parent=1 // pred_check
      _
    $region15: #{tpu_custom_call.1} parent=1 // pred_check_branch
      %18 = sbr.rel (0) target = $region17
    $region16: #{tpu_custom_call.1} parent=1 // pred_region
      _
    $region17: #{tpu_custom_call.1} parent=1 // pred_fallthru
      _
    // Predicated region
    $region18: #{tpu_custom_call.1} parent=1 // pred_check
      _
    $region19: #{tpu_custom_call.1} parent=1 // pred_check_branch
      %20 = sbr.rel (0) target = $region21
    $region20: #{tpu_custom_call.1} parent=1 // pred_region
      _
    $region21: #{tpu_custom_call.1} parent=1 // pred_fallthru
      _
    %v22 = vld [vmem:[%s0] sm:$0x7]
    %v23 = vpack.c.bf16 %v22, %v22
    %v24 = vld [vmem:[%s1] sm:$0xf]
    %v25 = vld [vmem:[%s1 + $0x4] sm:$0xf]
    %v26 = vld [vmem:[%s1 + $0x8] sm:$0xf]
    %v27 = vld [vmem:[%s1 + $0xc] sm:$0xf]
    %v28 = vld [vmem:[%s2] sm:$0x1]
    %v30 = vperm.slane %v28, 0
    %v36 = vunpack.c.l.b16 %v24
    %v37 = vunpack.c.l.b16 %v25
    %v38 = vunpack.c.l.b16 %v26
    %v39 = vunpack.c.l.b16 %v27
    %v40 = vpack.c.b16 %v37, %v36
    %v41 = vpack.c.b16 %v39, %v38
    %vm44 = vcmask 261120
    %v46 = vsel %vm44, %v23, 0
    %48 = vmatpush.bf16.msra.mxu0 0
    %49 = vmatpush.bf16.msra.mxu0 0
    %50 = vmatpush.bf16.msra.mxu0 0
    %51 = vmatpush.bf16.msra.mxu0 0
    %52 = vmatpush.bf16.msra.mxu0 0
    %53 = vmatpush.bf16.msra.mxu0 0
    %54 = vmatpush.bf16.msra.mxu0 %v41
    %55 = vmatpush.bf16.msra.mxu0 %v40
    %56 = vmatmul.bf16.gmra.mxu0 %v46
    %v57 = vpop.f32.mrf.mxu0
    %v58 = vadd.f32 %v30, %v57
    %v59 = vpop.f32.mrf.mxu0
    %60 = vdwg.mxu0
    %v61 = vmax.f32 %v58, 0.0
    %v62 = vpack.c.bf16 %v61, %v61
    %v63 = vld [vmem:[%s3] sm:$0xf]
    %v64 = vld [vmem:[%s3 + $0x4] sm:$0xf]
    %v65 = vld [vmem:[%s3 + $0x8] sm:$0xf]
    %v66 = vld [vmem:[%s3 + $0xc] sm:$0xf]
    %v67 = vld [vmem:[%s4] sm:$0x1]
    %v69 = vperm.slane %v67, 0
    %v75 = vunpack.c.l.b16 %v63
    %v76 = vunpack.c.l.b16 %v64
    %v77 = vunpack.c.l.b16 %v65
    %v78 = vunpack.c.l.b16 %v66
    %v79 = vpack.c.b16 %v76, %v75
    %v80 = vpack.c.b16 %v78, %v77
    %v84 = vsel %vm44, %v62, 0
    %86 = vmatpush.bf16.msra.mxu0 0
    %87 = vmatpush.bf16.msra.mxu0 0
    %88 = vmatpush.bf16.msra.mxu0 0
    %89 = vmatpush.bf16.msra.mxu0 0
    %90 = vmatpush.bf16.msra.mxu0 0
    %91 = vmatpush.bf16.msra.mxu0 0
    %92 = vmatpush.bf16.msra.mxu0 %v80
    %93 = vmatpush.bf16.msra.mxu0 %v79
    %94 = vmatmul.bf16.gmra.mxu0 %v84
    %v95 = vpop.f32.mrf.mxu0
    %v96 = vadd.f32 %v69, %v95
    %v97 = vpop.f32.mrf.mxu0
    %98 = vdwg.mxu0
    %vm99 = vcmask 59392
    %100 = vst.msk [vmem:[#allocation2] sm:$0x7] %vm99, %v96
    // Predicated region
    $region22: #{tpu_custom_call.1} parent=1 // pred_check
      _
    $region23: #{tpu_custom_call.1} parent=1 // pred_check_branch
      %102 = sbr.rel (0) target = $region25
    $region24: #{tpu_custom_call.1} parent=1 // pred_region
      %104 = vsyncadd [#allocation3], 0
      %s106 = sshll.u32 [#allocation2], 4
      %s107 = int_to_ptr.vmem [resolvable:$true] %s106
      %s108 = sshll.u32 %s5, 4
      %s109 = int_to_ptr.hbm [resolvable:$true] %s108
      %111 = dma.vmem_to_hbm [thread:$0]  %s107, 64, %s109, [#allocation3]
    $region25: #{tpu_custom_call.1} parent=1 // pred_fallthru
      _
    // Predicated region
    $region26: #{tpu_custom_call.1} parent=1 // pred_check
      _
    $region27: #{tpu_custom_call.1} parent=1 // pred_check_branch
      %113 = sbr.rel (0) target = $region29
    $region28: #{tpu_custom_call.1} parent=1 // pred_region
      %115 = dma.done [#allocation3], 64
    $region29: #{tpu_custom_call.1} parent=1 // pred_fallthru
      _
    %116 = vsyncpa [#allocation3], 1

</llo_original>
